<compile_context>
chip_gen: v5e
topology: v5e:2x2
jax: 0.10.0
libtpu: 0.0.40
codegen_flags: <defaults>
</compile_context>

<pallas_src>
import math

import jax
import jax.numpy as jnp
from jax import lax
from jax.experimental import pallas as pl
from jax.experimental.pallas import tpu as pltpu


_LANE = 128
_TARGET_BLOCK_BYTES = 8 * 1024 * 1024   # per output block (review: 4-8 MiB)
_VMEM_LIMIT_BYTES = 32 * 1024 * 1024    # explicit scoped-VMEM budget (all gens)
_MAX_FOLD = 16                          # cap on the lane-densifying fold factor


def _round_up(a: int, b: int) -> int:
    return -(-a // b) * b


def _make_kernel(k: int, r: int, row_width: int):
    if k == 1:
        def kernel(x_ref, o_ref):
            # x_ref: (tile_n, 1); o_ref: (tile_n, tile_r). Pure VPU lane splat.
            o_ref[...] = jnp.broadcast_to(x_ref[...], o_ref.shape)
        return kernel

    def kernel(x_ref, o_ref):
        # x_ref: (tile_n, k); o_ref: (tile_n, k*r) with (k*r) % 128 == 0.
        # Build the lane-dense row [x0]*r ++ [x1]*r ++ ... ++ [x_{k-1}]*r with a
        # chain of threshold selects applied in increasing m (last hit wins, so
        # lane j ends up with x[:, j // r]).  Uses only iota / compare / where /
        # lane-broadcast — no in-kernel reshape, no integer division.  k <= 16
        # keeps the extra VPU work under the HBM store time.
        tile_n = o_ref.shape[0]
        lane = lax.broadcasted_iota(jnp.int32, (1, row_width), 1)
        out = jnp.broadcast_to(x_ref[:, 0:1], (tile_n, row_width))
        for m in range(1, k):
            out = jnp.where(lane >= m * r, x_ref[:, m:m + 1], out)
        o_ref[...] = out
    return kernel


def append_repeat(x, rep_dims, *, target_block_bytes=_TARGET_BLOCK_BYTES):
    """Pallas equivalent of AppendRepeat(rep_dims)(x)."""
    rep_dims = tuple(int(d) for d in rep_dims)
    out_shape = tuple(x.shape) + rep_dims

    n = int(math.prod(x.shape))
    r = int(math.prod(rep_dims))

    # Degenerate repeat (rep_dims empty / all ones) or empty input: free reshape.
    if r == 1 or n == 0:
        return x.reshape(out_shape)

    itemsize = jnp.dtype(x.dtype).itemsize
    # Sublane alignment for packed dtypes: 8 (f32/i32), 16 (bf16), 32 (i8/fp8).
    sublane = 8 * max(1, 4 // itemsize)

    # ---- fold factor k: make the slab row width a multiple of 128 lanes ------
    k = 1
    if r % _LANE != 0:
        k0 = _LANE // math.gcd(r, _LANE)
        if (k0 <= _MAX_FOLD and n % k0 == 0
                and sublane * k0 * r * itemsize <= target_block_bytes):
            k = k0
        # TODO(synk): repeat widths with gcd(r,128) < 8 (e.g. rep_dims=(7,7))
        # would need k up to 128, which requires an in-kernel
        # (tile_n,k,r)->(tile_n,k*r) relayout; those shapes fall back to the
        # masked (N, r) slab below.

    n_rows = n // k            # rows of the flattened output slab
    row_width = k * r          # elements per slab row

    # ---- repeat-width tiling (only needed for huge, un-folded r) -------------
    tile_r = row_width
    if k == 1 and sublane * row_width * itemsize > target_block_bytes:
        tile_r = (target_block_bytes // (sublane * itemsize)) // _LANE * _LANE
        tile_r = max(_LANE, min(tile_r, row_width))
    grid_r = pl.cdiv(row_width, tile_r)

    # ---- row tiling -----------------------------------------------------------
    max_rows = max(
        sublane,
        (target_block_bytes // (tile_r * itemsize)) // sublane * sublane)
    tile_n = n_rows if n_rows <= max_rows else max_rows
    grid_n = pl.cdiv(n_rows, tile_n)

    # v7x megacore: ensure >= 2 blocks so the "parallel" grid axes can actually
    # shard the store work across both TensorCores (harmless on v5e/v6e).
    if grid_n * grid_r < 2 and n_rows >= 2 * sublane:
        tile_n = _round_up((n_rows + 1) // 2, sublane)
        grid_n = pl.cdiv(n_rows, tile_n)

    x2 = x.reshape(n_rows, k)          # row-major metadata reshape (free)

    out2 = pl.pallas_call(
        _make_kernel(k, r, row_width),
        out_shape=jax.ShapeDtypeStruct((n_rows, row_width), x.dtype),
        grid=(grid_n, grid_r),
        in_specs=[pl.BlockSpec((tile_n, k), lambda i, j: (i, 0))],
        out_specs=pl.BlockSpec((tile_n, tile_r), lambda i, j: (i, j)),
        compiler_params=pltpu.CompilerParams(
            dimension_semantics=("parallel", "parallel"),
            vmem_limit_bytes=_VMEM_LIMIT_BYTES,
        ),
        cost_estimate=pl.CostEstimate(
            flops=0,
            transcendentals=0,
            bytes_accessed=n * itemsize + n * r * itemsize,
        ),
    )(x2)

    # Row-major reshape of the contiguous slab -> S + rep_dims (layout-identical
    # to the PyTorch repeat output).
    return out2.reshape(out_shape)


def append_repeat_ref(x, rep_dims):
    """Pure-JAX reference mirroring the PyTorch forward (fusable by XLA)."""
    rep_dims = tuple(int(d) for d in rep_dims)
    expanded = x.reshape(tuple(x.shape) + (1,) * len(rep_dims))
    return jnp.broadcast_to(expanded, tuple(x.shape) + rep_dims)


if __name__ == "__main__":
    # Primary example from the module docstring: (B, C) -> (B, C, H, W).
    B, C, H, W = 2, 4, 16, 16
    x = jax.random.normal(jax.random.PRNGKey(0), (B, C), dtype=jnp.float32)
    out = jax.block_until_ready(append_repeat(x, (H, W)))
    assert out.shape == (B, C, H, W), out.shape
    assert out.dtype == x.dtype, out.dtype
    assert jnp.array_equal(out, append_repeat_ref(x, (H, W)))

    # Misaligned repeat width exercising the lane-densifying fold (r=48 -> k=8).
    x2 = jax.random.normal(jax.random.PRNGKey(1), (4, 8), dtype=jnp.float32)
    out2 = jax.block_until_ready(append_repeat(x2, (3, 16)))
    assert jnp.array_equal(out2, append_repeat_ref(x2, (3, 16)))

    # Misaligned width that cannot be folded (gcd(49,128)=1): masked fallback.
    x3 = jax.random.normal(jax.random.PRNGKey(2), (2, 4), dtype=jnp.float32)
    out3 = jax.block_until_ready(append_repeat(x3, (7, 7)))
    assert jnp.array_equal(out3, append_repeat_ref(x3, (7, 7)))

    # Multi-block path (row tiling + repeat-width tiling + ragged last block),
    # forced at small shapes with a tiny block budget.
    x4 = jax.random.normal(jax.random.PRNGKey(3), (10, 3), dtype=jnp.float32)
    out4 = jax.block_until_ready(
        append_repeat(x4, (16, 16), target_block_bytes=4096))
    assert jnp.array_equal(out4, append_repeat_ref(x4, (16, 16)))

    # Megacore split path (single-block work split into two row blocks).
    x5 = jax.random.normal(jax.random.PRNGKey(4), (8, 4), dtype=jnp.float32)
    out5 = jax.block_until_ready(append_repeat(x5, (16, 16)))
    assert jnp.array_equal(out5, append_repeat_ref(x5, (16, 16)))

    # Degenerate rep_dims -> pure reshape, no kernel launch.
    out6 = append_repeat(x3, (1, 1))
    assert jnp.array_equal(out6, append_repeat_ref(x3, (1, 1)))

    print("KERNEL_OK")
</pallas_src>

<mosaic_0001>
module attributes {stable_mosaic.version = 11 : i64} {
  func.func @kernel(%arg0: i32, %arg1: i32, %arg2: memref<8x1xf32, #tpu.memory_space<vmem>>, %arg3: memref<8x256xf32, #tpu.memory_space<vmem>>) attributes {dimension_semantics = [#tpu.dimension_semantics<parallel>, #tpu.dimension_semantics<parallel>], iteration_bounds = array<i64: 1, 1>, scalar_prefetch = 0 : i64, scratch_operands = 0 : i64, tpu.core_type = #tpu.core_type<tc>, window_params = [{transform_indices = @transform_0, window_bounds = array<i64: 8, 1>}, {transform_indices = @transform_1, window_bounds = array<i64: 8, 256>}]} {
    %c0 = arith.constant 0 : index
    %c0_0 = arith.constant 0 : index
    %0 = vector.load %arg2[%c0, %c0_0] : memref<8x1xf32, #tpu.memory_space<vmem>>, vector<8x1xf32>
    %1 = vector.shape_cast %0 : vector<8x1xf32> to vector<8x1xf32>
    %2 = vector.broadcast %1 : vector<8x1xf32> to vector<8x256xf32>
    %c0_1 = arith.constant 0 : index
    %c0_2 = arith.constant 0 : index
    %3 = vector.load %arg3[%c0_1, %c0_2] : memref<8x256xf32, #tpu.memory_space<vmem>>, vector<8x256xf32>
    tpu.vector_store %arg3[%c0_1, %c0_2], %2 {strides = array<i32>} : memref<8x256xf32, #tpu.memory_space<vmem>>, vector<8x256xf32>,
    return
  }
  func.func @transform_0(%arg0: i32, %arg1: i32) -> (i32, i32) {
    %c0_i32 = arith.constant 0 : i32
    %c0_i32_0 = arith.constant 0 : i32
    return %arg0, %c0_i32 : i32, i32
  }
  func.func @transform_1(%arg0: i32, %arg1: i32) -> (i32, i32) {
    %c0_i32 = arith.constant 0 : i32
    return %arg0, %arg1 : i32, i32
  }
}

</mosaic_0001>

<llo_original>
// kernel: tpu_custom_call.1
$region0: #{tpu_custom_call.1}
  #allocation0 [shape = 'u32[]', space=smem, size = 0x4, offset = 0x4, fixed_abs, tag = 'smem constant byte address 0x4 - core index']
  #allocation1 [shape = 'u32[72,128]{1,0:T(1,128)}', space=vmem, size = 0x9000, scoped, tag = 'internal scratch']
  %s0 = inlined_call_operand.vmem [shape: f32[8,1], index: 0, kind: input, shape index: {}]
  %s1 = inlined_call_operand.hbm [shape: f32[8,256], index: 1, kind: output, shape index: {}]
  %s2 = sld [smem:[#allocation0]]
  $region14: #{tpu_custom_call.1} parent=0
    _
  %s4 = ssub.s32 1, %s2
  %s5 = scalar_select 0, %s4, %s2
  $region1: #{tpu_custom_call.1} parent=0
    #allocation2 [shape = 'u8[8192]{0}', space=vmem, size = 0x2000, scoped, tag = 'output window, operand 0, single buffered']
    #allocation3 [shape = 's32[1]{0}', space=sflag, size = 0x4, scoped, tag = 'scoped memory for tpu_custom_call.1']
    %6 = vsyncpa [#allocation3], 0
    // Predicated region
    $region2: #{tpu_custom_call.1} parent=1 // pred_check
      _
    $region3: #{tpu_custom_call.1} parent=1 // pred_check_branch
      %8 = sbr.rel (0) target = $region5
    $region4: #{tpu_custom_call.1} parent=1 // pred_region
      _
    $region5: #{tpu_custom_call.1} parent=1 // pred_fallthru
      _
    %v9 = vld [vmem:[%s0] sm:$0xff]
    %11 = vset.pattern.permute.xlu0 0
    %12 = vperm.xlu0 %11, %v9
    %v13 = vpop.permute.xlu0 %12
    %15 = vst [vmem:[#allocation2] sm:$0xff] %v13
    %16 = vst [vmem:[#allocation2 + $0x8] sm:$0xff] %v13
    // Predicated region
    $region6: #{tpu_custom_call.1} parent=1 // pred_check
      _
    $region7: #{tpu_custom_call.1} parent=1 // pred_check_branch
      %18 = sbr.rel (0) target = $region9
    $region8: #{tpu_custom_call.1} parent=1 // pred_region
      %20 = vsyncadd [#allocation3], 0
      %s22 = sshll.u32 [#allocation2], 4
      %s23 = int_to_ptr.vmem [resolvable:$true] %s22
      %s24 = sshll.u32 %s1, 4
      %s25 = int_to_ptr.hbm [resolvable:$true] %s24
      %27 = dma.vmem_to_hbm [thread:$0]  %s23, 256, %s25, [#allocation3]
    $region9: #{tpu_custom_call.1} parent=1 // pred_fallthru
      _
    // Predicated region
    $region10: #{tpu_custom_call.1} parent=1 // pred_check
      _
    $region11: #{tpu_custom_call.1} parent=1 // pred_check_branch
      %29 = sbr.rel (0) target = $region13
    $region12: #{tpu_custom_call.1} parent=1 // pred_region
      %31 = dma.done [#allocation3], 256
    $region13: #{tpu_custom_call.1} parent=1 // pred_fallthru
      _
    %32 = vsyncpa [#allocation3], 1

</llo_original>
